<compile_context>
chip_gen: v6e
topology: v6e:2x2x1
jax: 0.10.0
libtpu: 0.0.40
codegen_flags: <defaults>
</compile_context>

<pallas_src>
import functools

import jax
import jax.numpy as jnp
from jax.experimental import pallas as pl
from jax.experimental.pallas import tpu as pltpu


def _attention_kernel(enc_ref, dec_ref, w1_ref, w2_ref, b12_ref, wf_ref,
                      ctx_ref, alpha_ref, *, num_pixels, batch_size,
                      block_batch, ragged):
    # enc_ref  : (BM*P, E) f32   encoder rows (pixel-major) for this batch block
    # dec_ref  : (BM, D)   f32   decoder hidden states
    # w1_ref   : (E, A)    bf16  encoder_att weight (in, out)
    # w2_ref   : (D, A)    bf16  decoder_att weight (in, out)
    # b12_ref  : (1, A)    f32   folded bias b1 + b2
    # wf_ref   : (A, 1)    f32   full_att weight as a column vector
    # ctx_ref  : (BM, E)   f32   output: attention-weighted encoding
    # alpha_ref: (BM*P, 1) f32   output: attention weights in row space
    P = num_pixels
    BM = block_batch
    rows = BM * P

    # Block-local row -> batch-segment one-hot mask, built from iotas (VPU).
    row_id = jax.lax.broadcasted_iota(jnp.int32, (rows, BM), 0)
    col_id = jax.lax.broadcasted_iota(jnp.int32, (rows, BM), 1)
    seg = jnp.logical_and(row_id >= col_id * P, row_id < (col_id + 1) * P)

    enc = enc_ref[...]                                           # (rows, E)
    if ragged:
        # Zero the undefined rows of a ragged last block so 0 * NaN garbage
        # can never leak into the block-level matmuls below.
        grow = (jax.lax.broadcasted_iota(jnp.int32, (rows, 1), 0)
                + pl.program_id(0) * rows)
        row_valid = grow < batch_size * P                        # (rows, 1)
        enc = jnp.where(row_valid, enc, 0.0)
    enc_bf = enc.astype(jnp.bfloat16)                            # (rows, E)

    # att1 for every (batch, pixel) row: one bf16 MXU matmul, f32 accumulate.
    att1 = jnp.dot(enc_bf, w1_ref[...],
                   preferred_element_type=jnp.float32)           # (rows, A)

    # att2 + folded bias for the whole batch block (tiny MXU matmul).
    att2 = jnp.dot(dec_ref[...].astype(jnp.bfloat16), w2_ref[...],
                   preferred_element_type=jnp.float32) + b12_ref[...]   # (BM, A)
    if ragged:
        bid = (jax.lax.broadcasted_iota(jnp.int32, (BM, 1), 0)
               + pl.program_id(0) * BM)
        att2 = jnp.where(bid < batch_size, att2, 0.0)

    # Expand att2 to pixel-row space with a tiny one-hot matmul (no loops,
    # no reshapes):  att2_rows[r, :] = att2[batch(r), :].
    onehot = seg.astype(jnp.float32)                             # (rows, BM)
    att2_rows = jnp.dot(onehot, att2,
                        preferred_element_type=jnp.float32)      # (rows, A)

    a = jnp.maximum(att1 + att2_rows, 0.0)                       # (rows, A) f32

    # Scores: one block-level reduction against wf, kept in f32.
    s = jnp.dot(a, wf_ref[...],
                preferred_element_type=jnp.float32)              # (rows, 1)

    # Segmented (per batch row) softmax over the pixel axis, all f32, exact.
    neg = jnp.float32(-1e30)
    mx = jnp.max(jnp.where(seg, s, neg), axis=0, keepdims=True)          # (1, BM)
    mx_rows = jnp.sum(jnp.where(seg, mx, 0.0), axis=1, keepdims=True)    # (rows, 1)
    e = jnp.exp(s - mx_rows)                                             # (rows, 1)
    if ragged:
        e = jnp.where(row_valid, e, 0.0)
    den = jnp.sum(jnp.where(seg, e, 0.0), axis=0, keepdims=True)         # (1, BM)
    den_rows = jnp.sum(jnp.where(seg, den, 0.0), axis=1, keepdims=True)  # (rows, 1)
    alpha = e / jnp.maximum(den_rows, jnp.float32(1e-30))        # exact normalization
    alpha_ref[...] = alpha                                       # single dense store

    # Context: ONE dense MXU matmul with the block-diagonal alpha matrix:
    #   ctx[b, :] = sum_r alpha_blk[r, b] * enc[r, :]
    alpha_blk = jnp.where(seg, alpha, 0.0).astype(jnp.bfloat16)  # (rows, BM)
    ctx = jax.lax.dot_general(alpha_blk, enc_bf,
                              dimension_numbers=(((0,), (0,)), ((), ())),
                              preferred_element_type=jnp.float32)        # (BM, E)
    ctx_ref[...] = ctx


def _vmem_capacity_bytes():
    try:
        return int(pltpu.get_tpu_info().vmem_capacity_bytes)
    except Exception:
        return 64 * 1024 * 1024          # conservative (v7x per-core VMEM)


def _vmem_bytes_estimate(bm, P, E, D, A):
    f4, b2 = 4, 2
    rows = bm * P
    enc_in = 2 * rows * E * f4           # double-buffered f32 encoder block
    enc_bf = rows * E * b2               # in-kernel bf16 copy
    acts = 3 * rows * A * f4             # att1 / att2_rows / relu block (f32)
    masks = 2 * rows * bm * f4           # iota masks + block-diagonal alpha
    vecs = 8 * rows * f4                 # s / e / alpha / row masks
    dec_in = 2 * bm * D * f4
    wts = 2 * ((E + D) * A * b2 + 2 * A * f4)
    outs = 2 * (bm * E * f4 + rows * f4)
    return enc_in + enc_bf + acts + masks + vecs + dec_in + wts + outs


def _pick_block_batch(B, P, E, D, A):
    if B <= 8:
        return B                         # one full-dim block, no ragged handling
    budget = int(_vmem_capacity_bytes() * 0.7)
    if (B % 16 == 0 and B // 16 >= 4
            and _vmem_bytes_estimate(16, P, E, D, A) <= budget):
        return 16
    return 8                             # >=2 grid steps; ragged tail handled in-kernel


@jax.jit
def attention_forward(encoder_out, decoder_hidden, params):
    """params = (w1, b1, w2, b2, wf, bf) with shapes
       (E,A), (1,A), (D,A), (1,A), (1,A), (1,1)  (weights stored as (in, out))."""
    w1, b1, w2, b2, wf, bf = params
    del bf  # softmax is shift-invariant -> full_att bias never affects outputs
    B, P, E = encoder_out.shape
    D = decoder_hidden.shape[-1]
    A = w1.shape[1]

    BM = _pick_block_batch(B, P, E, D, A)
    grid = (pl.cdiv(B, BM),)
    ragged = (B % BM) != 0

    # Free, metadata-only view (contiguous collapse).  No dtype cast and no
    # padding -> no extra HBM pass over the large encoder activations.
    enc2d = encoder_out.reshape(B * P, E)
    dec = decoder_hidden.astype(jnp.float32)

    w1b = w1.astype(jnp.bfloat16)                        # small weight casts only
    w2b = w2.astype(jnp.bfloat16)
    b12 = (b1 + b2).astype(jnp.float32).reshape(1, A)    # folded attention biases
    wfc = wf.astype(jnp.float32).reshape(A, 1)           # f32 score reduction

    est = _vmem_bytes_estimate(BM, P, E, D, A)
    cap = _vmem_capacity_bytes()
    vmem_limit = int(min(cap, max(32 * 1024 * 1024, int(1.4 * est))))

    kernel = functools.partial(
        _attention_kernel, num_pixels=P, batch_size=B,
        block_batch=BM, ragged=ragged)

    grid_spec = pltpu.PrefetchScalarGridSpec(
        num_scalar_prefetch=0,
        grid=grid,
        in_specs=[
            pl.BlockSpec((BM * P, E), lambda i: (i, 0)),   # encoder rows (f32)
            pl.BlockSpec((BM, D),     lambda i: (i, 0)),   # decoder hidden
            pl.BlockSpec((E, A),      lambda i: (0, 0)),   # W1 (bf16, resident)
            pl.BlockSpec((D, A),      lambda i: (0, 0)),   # W2 (bf16, resident)
            pl.BlockSpec((1, A),      lambda i: (0, 0)),   # b1 + b2
            pl.BlockSpec((A, 1),      lambda i: (0, 0)),   # wf column (f32)
        ],
        out_specs=[
            pl.BlockSpec((BM, E),     lambda i: (i, 0)),   # ctx (dense store)
            pl.BlockSpec((BM * P, 1), lambda i: (i, 0)),   # alpha (row space)
        ],
    )

    ctx, alpha_col = pl.pallas_call(
        kernel,
        out_shape=(jax.ShapeDtypeStruct((B, E), jnp.float32),
                   jax.ShapeDtypeStruct((B * P, 1), jnp.float32)),
        grid_spec=grid_spec,
        compiler_params=pltpu.CompilerParams(
            dimension_semantics=("parallel",),
            vmem_limit_bytes=vmem_limit,
        ),
    )(enc2d, dec, w1b, w2b, b12, wfc)

    # Free metadata reshape of the tiny alpha array back to (B, P).
    return ctx, alpha_col.reshape(B, P)


def _reference(encoder_out, decoder_hidden, params):
    """Pure-JAX f32 reference replicating the PyTorch forward exactly."""
    w1, b1, w2, b2, wf, bf = params
    att1 = encoder_out @ w1 + b1                        # (B, P, A)
    att2 = decoder_hidden @ w2 + b2                     # (B, A)
    a = jnp.maximum(att1 + att2[:, None, :], 0.0)       # (B, P, A)
    att = jnp.einsum('bpa,a->bp', a, wf[0]) + bf[0, 0]  # (B, P)
    alpha = jax.nn.softmax(att, axis=1)
    ctx = jnp.einsum('bp,bpe->be', alpha, encoder_out)
    return ctx, alpha


def _run_case(key, B, P, E, D, A, params):
    k0, k1 = jax.random.split(key)
    encoder_out = jax.random.normal(k0, (B, P, E), dtype=jnp.float32)
    decoder_hidden = jax.random.normal(k1, (B, D), dtype=jnp.float32)

    ctx, alpha = attention_forward(encoder_out, decoder_hidden, params)
    jax.block_until_ready((ctx, alpha))

    ctx_ref, alpha_ref = _reference(encoder_out, decoder_hidden, params)
    assert ctx.shape == (B, E) and alpha.shape == (B, P)
    assert jnp.allclose(ctx, ctx_ref, atol=2e-2, rtol=2e-2)
    assert jnp.allclose(alpha, alpha_ref, atol=2e-2, rtol=2e-2)


if __name__ == "__main__":
    # Small deterministic shapes consistent with the module semantics.
    E, D, A = 32, 64, 32   # encoder_dim, decoder_dim, attention_dim

    key = jax.random.PRNGKey(0)
    k = jax.random.split(key, 8)
    w1 = jax.random.normal(k[0], (E, A), dtype=jnp.float32) * 0.1
    b1 = jax.random.normal(k[1], (1, A), dtype=jnp.float32) * 0.1
    w2 = jax.random.normal(k[2], (D, A), dtype=jnp.float32) * 0.1
    b2 = jax.random.normal(k[3], (1, A), dtype=jnp.float32) * 0.1
    wf = jax.random.normal(k[4], (1, A), dtype=jnp.float32) * 0.1
    bf = jax.random.normal(k[5], (1, 1), dtype=jnp.float32) * 0.1
    params = (w1, b1, w2, b2, wf, bf)

    # Case 1: tiny batch (B <= 8 -> single full-dim block, grid=1).
    _run_case(k[6], B=2, P=16, E=E, D=D, A=A, params=params)
    # Case 2: B > 8 and not a multiple of 8 (exercises 2 grid steps and the
    # ragged-last-block masking path).
    _run_case(k[7], B=10, P=20, E=E, D=D, A=A, params=params)

    print("KERNEL_OK")
</pallas_src>

<mosaic_0001>
module attributes {stable_mosaic.version = 11 : i64} {
  func.func @_attention_kernel(%arg0: i32, %arg1: memref<32x32xf32, #tpu.memory_space<vmem>>, %arg2: memref<2x64xf32, #tpu.memory_space<vmem>>, %arg3: memref<32x32xbf16, #tpu.memory_space<vmem>>, %arg4: memref<64x32xbf16, #tpu.memory_space<vmem>>, %arg5: memref<1x32xf32, #tpu.memory_space<vmem>>, %arg6: memref<32x1xf32, #tpu.memory_space<vmem>>, %arg7: memref<2x32xf32, #tpu.memory_space<vmem>>, %arg8: memref<32x1xf32, #tpu.memory_space<vmem>>) attributes {dimension_semantics = [#tpu.dimension_semantics<parallel>], iteration_bounds = array<i64: 1>, scalar_prefetch = 0 : i64, scratch_operands = 0 : i64, tpu.core_type = #tpu.core_type<tc>, window_params = [{transform_indices = @transform_0, window_bounds = array<i64: 32, 32>}, {transform_indices = @transform_1, window_bounds = array<i64: 2, 64>}, {pipeline_mode = #tpu.pipeline_mode<synchronous>, transform_indices = @transform_2, window_bounds = array<i64: 32, 32>}, {pipeline_mode = #tpu.pipeline_mode<synchronous>, transform_indices = @transform_3, window_bounds = array<i64: 64, 32>}, {pipeline_mode = #tpu.pipeline_mode<synchronous>, transform_indices = @transform_4, window_bounds = array<i64: 1, 32>}, {pipeline_mode = #tpu.pipeline_mode<synchronous>, transform_indices = @transform_5, window_bounds = array<i64: 32, 1>}, {transform_indices = @transform_6, window_bounds = array<i64: 2, 32>}, {transform_indices = @transform_7, window_bounds = array<i64: 32, 1>}]} {
    %0 = tpu.iota {dimensions = array<i32: 0>} : vector<32x2xi32>
    %1 = tpu.iota {dimensions = array<i32: 1>} : vector<32x2xi32>
    %c16_i32 = arith.constant 16 : i32
    %2 = vector.broadcast %c16_i32 : i32 to vector<32x2xi32>
    %3 = arith.muli %1, %2 : vector<32x2xi32>
    %4 = arith.cmpi sge, %0, %3 : vector<32x2xi32>
    %c1_i32 = arith.constant 1 : i32
    %5 = vector.broadcast %c1_i32 : i32 to vector<32x2xi32>
    %6 = arith.addi %1, %5 : vector<32x2xi32>
    %c16_i32_0 = arith.constant 16 : i32
    %7 = vector.broadcast %c16_i32_0 : i32 to vector<32x2xi32>
    %8 = arith.muli %6, %7 : vector<32x2xi32>
    %9 = arith.cmpi slt, %0, %8 : vector<32x2xi32>
    %10 = arith.andi %4, %9 : vector<32x2xi1>
    %c0 = arith.constant 0 : index
    %c0_1 = arith.constant 0 : index
    %11 = vector.load %arg1[%c0, %c0_1] : memref<32x32xf32, #tpu.memory_space<vmem>>, vector<32x32xf32>
    %12 = arith.truncf %11 : vector<32x32xf32> to vector<32x32xbf16>
    %c0_2 = arith.constant 0 : index
    %c0_3 = arith.constant 0 : index
    %13 = vector.load %arg3[%c0_2, %c0_3] : memref<32x32xbf16, #tpu.memory_space<vmem>>, vector<32x32xbf16>
    %cst = arith.constant dense<0.000000e+00> : vector<32x32xf32>
    %14 = tpu.matmul %12, %13, %cst {dimension_numbers = #tpu.dot_dimension_numbers<[1], [0], [0], [1], [0, 0, 1, 1], [], []>} : vector<32x32xbf16>, vector<32x32xbf16>, vector<32x32xf32> -> vector<32x32xf32>
    %c0_4 = arith.constant 0 : index
    %c0_5 = arith.constant 0 : index
    %15 = vector.load %arg2[%c0_4, %c0_5] : memref<2x64xf32, #tpu.memory_space<vmem>>, vector<2x64xf32>
    %16 = arith.truncf %15 : vector<2x64xf32> to vector<2x64xbf16>
    %c0_6 = arith.constant 0 : index
    %c0_7 = arith.constant 0 : index
    %17 = vector.load %arg4[%c0_6, %c0_7] : memref<64x32xbf16, #tpu.memory_space<vmem>>, vector<64x32xbf16>
    %cst_8 = arith.constant dense<0.000000e+00> : vector<2x32xf32>
    %18 = tpu.matmul %16, %17, %cst_8 {dimension_numbers = #tpu.dot_dimension_numbers<[1], [0], [0], [1], [0, 0, 1, 1], [], []>} : vector<2x64xbf16>, vector<64x32xbf16>, vector<2x32xf32> -> vector<2x32xf32>
    %c0_9 = arith.constant 0 : index
    %c0_10 = arith.constant 0 : index
    %19 = vector.load %arg5[%c0_9, %c0_10] : memref<1x32xf32, #tpu.memory_space<vmem>>, vector<1x32xf32>
    %20 = vector.broadcast %19 : vector<1x32xf32> to vector<2x32xf32>
    %21 = arith.addf %18, %20 : vector<2x32xf32>
    %22 = arith.extui %10 : vector<32x2xi1> to vector<32x2xi32>
    %23 = arith.sitofp %22 : vector<32x2xi32> to vector<32x2xf32>
    %cst_11 = arith.constant dense<0.000000e+00> : vector<32x32xf32>
    %24 = tpu.matmul %23, %21, %cst_11 {dimension_numbers = #tpu.dot_dimension_numbers<[1], [0], [0], [1], [0, 0, 1, 1], [], []>} : vector<32x2xf32>, vector<2x32xf32>, vector<32x32xf32> -> vector<32x32xf32>
    %25 = arith.addf %14, %24 : vector<32x32xf32>
    %cst_12 = arith.constant 0.000000e+00 : f32
    %26 = vector.broadcast %cst_12 : f32 to vector<32x32xf32>
    %27 = arith.maximumf %25, %26 : vector<32x32xf32>
    %c0_13 = arith.constant 0 : index
    %c0_14 = arith.constant 0 : index
    %28 = vector.load %arg6[%c0_13, %c0_14] : memref<32x1xf32, #tpu.memory_space<vmem>>, vector<32x1xf32>
    %cst_15 = arith.constant dense<0.000000e+00> : vector<32x1xf32>
    %29 = tpu.matmul %27, %28, %cst_15 {dimension_numbers = #tpu.dot_dimension_numbers<[1], [0], [0], [1], [0, 0, 1, 1], [], []>} : vector<32x32xf32>, vector<32x1xf32>, vector<32x1xf32> -> vector<32x1xf32>
    %cst_16 = arith.constant -1.000000e+30 : f32
    %30 = vector.shape_cast %29 : vector<32x1xf32> to vector<32x1xf32>
    %31 = vector.broadcast %30 : vector<32x1xf32> to vector<32x2xf32>
    %32 = vector.broadcast %cst_16 : f32 to vector<32x2xf32>
    %33 = arith.select %10, %31, %32 : vector<32x2xi1>, vector<32x2xf32>
    %cst_17 = arith.constant dense<0xFF800000> : vector<2xf32>
    %34 = vector.multi_reduction <maximumf>, %33, %cst_17 [0] : vector<32x2xf32> to vector<2xf32>
    %35 = vector.shape_cast %34 : vector<2xf32> to vector<1x2xf32>
    %cst_18 = arith.constant 0.000000e+00 : f32
    %36 = vector.shape_cast %35 : vector<1x2xf32> to vector<1x2xf32>
    %37 = vector.broadcast %36 : vector<1x2xf32> to vector<32x2xf32>
    %38 = vector.broadcast %cst_18 : f32 to vector<32x2xf32>
    %39 = arith.select %10, %37, %38 : vector<32x2xi1>, vector<32x2xf32>
    %cst_19 = arith.constant dense<0.000000e+00> : vector<32xf32>
    %40 = vector.multi_reduction <add>, %39, %cst_19 [1] : vector<32x2xf32> to vector<32xf32>
    %41 = vector.shape_cast %40 : vector<32xf32> to vector<32x1xf32>
    %42 = arith.subf %29, %41 : vector<32x1xf32>
    %43 = math.exp %42 : vector<32x1xf32>
    %cst_20 = arith.constant 0.000000e+00 : f32
    %44 = vector.shape_cast %43 : vector<32x1xf32> to vector<32x1xf32>
    %45 = vector.broadcast %44 : vector<32x1xf32> to vector<32x2xf32>
    %46 = vector.broadcast %cst_20 : f32 to vector<32x2xf32>
    %47 = arith.select %10, %45, %46 : vector<32x2xi1>, vector<32x2xf32>
    %cst_21 = arith.constant dense<0.000000e+00> : vector<2xf32>
    %48 = vector.multi_reduction <add>, %47, %cst_21 [0] : vector<32x2xf32> to vector<2xf32>
    %49 = vector.shape_cast %48 : vector<2xf32> to vector<1x2xf32>
    %cst_22 = arith.constant 0.000000e+00 : f32
    %50 = vector.shape_cast %49 : vector<1x2xf32> to vector<1x2xf32>
    %51 = vector.broadcast %50 : vector<1x2xf32> to vector<32x2xf32>
    %52 = vector.broadcast %cst_22 : f32 to vector<32x2xf32>
    %53 = arith.select %10, %51, %52 : vector<32x2xi1>, vector<32x2xf32>
    %cst_23 = arith.constant dense<0.000000e+00> : vector<32xf32>
    %54 = vector.multi_reduction <add>, %53, %cst_23 [1] : vector<32x2xf32> to vector<32xf32>
    %55 = vector.shape_cast %54 : vector<32xf32> to vector<32x1xf32>
    %cst_24 = arith.constant 1.000000e-30 : f32
    %56 = vector.broadcast %cst_24 : f32 to vector<32x1xf32>
    %57 = arith.maximumf %55, %56 : vector<32x1xf32>
    %58 = arith.divf %43, %57 : vector<32x1xf32>
    %c0_25 = arith.constant 0 : index
    %c0_26 = arith.constant 0 : index
    %59 = vector.load %arg8[%c0_25, %c0_26] : memref<32x1xf32, #tpu.memory_space<vmem>>, vector<32x1xf32>
    tpu.vector_store %arg8[%c0_25, %c0_26], %58 {strides = array<i32>} : memref<32x1xf32, #tpu.memory_space<vmem>>, vector<32x1xf32>,
    %cst_27 = arith.constant 0.000000e+00 : f32
    %60 = vector.shape_cast %58 : vector<32x1xf32> to vector<32x1xf32>
    %61 = vector.broadcast %60 : vector<32x1xf32> to vector<32x2xf32>
    %62 = vector.broadcast %cst_27 : f32 to vector<32x2xf32>
    %63 = arith.select %10, %61, %62 : vector<32x2xi1>, vector<32x2xf32>
    %64 = arith.truncf %63 : vector<32x2xf32> to vector<32x2xbf16>
    %cst_28 = arith.constant dense<0.000000e+00> : vector<2x32xf32>
    %65 = tpu.matmul %64, %12, %cst_28 {dimension_numbers = #tpu.dot_dimension_numbers<[0], [0], [1], [1], [0, 1, 1, 1], [], []>} : vector<32x2xbf16>, vector<32x32xbf16>, vector<2x32xf32> -> vector<2x32xf32>
    %c0_29 = arith.constant 0 : index
    %c0_30 = arith.constant 0 : index
    %66 = vector.load %arg7[%c0_29, %c0_30] : memref<2x32xf32, #tpu.memory_space<vmem>>, vector<2x32xf32>
    tpu.vector_store %arg7[%c0_29, %c0_30], %65 {strides = array<i32>} : memref<2x32xf32, #tpu.memory_space<vmem>>, vector<2x32xf32>,
    return
  }
  func.func @transform_0(%arg0: i32) -> (i32, i32) {
    %c0_i32 = arith.constant 0 : i32
    %c0_i32_0 = arith.constant 0 : i32
    return %arg0, %c0_i32 : i32, i32
  }
  func.func @transform_1(%arg0: i32) -> (i32, i32) {
    %c0_i32 = arith.constant 0 : i32
    %c0_i32_0 = arith.constant 0 : i32
    return %arg0, %c0_i32 : i32, i32
  }
  func.func @transform_2(%arg0: i32) -> (i32, i32) {
    %c0_i32 = arith.constant 0 : i32
    %c0_i32_0 = arith.constant 0 : i32
    %c0_i32_1 = arith.constant 0 : i32
    return %c0_i32, %c0_i32_0 : i32, i32
  }
  func.func @transform_3(%arg0: i32) -> (i32, i32) {
    %c0_i32 = arith.constant 0 : i32
    %c0_i32_0 = arith.constant 0 : i32
    %c0_i32_1 = arith.constant 0 : i32
    return %c0_i32, %c0_i32_0 : i32, i32
  }
  func.func @transform_4(%arg0: i32) -> (i32, i32) {
    %c0_i32 = arith.constant 0 : i32
    %c0_i32_0 = arith.constant 0 : i32
    %c0_i32_1 = arith.constant 0 : i32
    return %c0_i32, %c0_i32_0 : i32, i32
  }
  func.func @transform_5(%arg0: i32) -> (i32, i32) {
    %c0_i32 = arith.constant 0 : i32
    %c0_i32_0 = arith.constant 0 : i32
    %c0_i32_1 = arith.constant 0 : i32
    return %c0_i32, %c0_i32_0 : i32, i32
  }
  func.func @transform_6(%arg0: i32) -> (i32, i32) {
    %c0_i32 = arith.constant 0 : i32
    %c0_i32_0 = arith.constant 0 : i32
    return %arg0, %c0_i32 : i32, i32
  }
  func.func @transform_7(%arg0: i32) -> (i32, i32) {
    %c0_i32 = arith.constant 0 : i32
    %c0_i32_0 = arith.constant 0 : i32
    return %arg0, %c0_i32 : i32, i32
  }
}

</mosaic_0001>

<llo_original>
// kernel: attention_forward.1
$region0: #{attention_forward.1}
  #allocation0 [shape = 'u32[]', space=smem, size = 0x4, offset = 0x4, fixed_abs, tag = 'smem constant byte address 0x4 - core index']
  #allocation1 [shape = 'u32[144,128]{1,0:T(1,128)}', space=vmem, size = 0x12000, scoped, tag = 'internal scratch']
  %s0 = inlined_call_operand.vmem [shape: f32[32,32], index: 0, kind: input, shape index: {}]
  %s1 = inlined_call_operand.vmem [shape: f32[2,64], index: 1, kind: input, shape index: {}]
  %s2 = inlined_call_operand.vmem [shape: bf16[32,32], index: 2, kind: input, shape index: {}]
  %s3 = inlined_call_operand.vmem [shape: bf16[64,32], index: 3, kind: input, shape index: {}]
  %s4 = inlined_call_operand.vmem [shape: f32[1,32], index: 4, kind: input, shape index: {}]
  %s5 = inlined_call_operand.vmem [shape: f32[32,1], index: 5, kind: input, shape index: {}]
  %s6 = inlined_call_operand.hbm [shape: f32[2,32], index: 6, kind: output, shape index: {0}]
  %s7 = inlined_call_operand.vmem [shape: f32[32,1], index: 7, kind: output, shape index: {1}]
  %8 = xla_tuple %s6, %s7
  %s9 = sld [smem:[#allocation0]]
  $region42: #{attention_forward.1} parent=0
    _
  %s11 = ssub.s32 1, %s9
  %s12 = scalar_select 0, %s11, %s9
  $region1: #{attention_forward.1} parent=0
    #allocation2 [shape = 'u8[1024]{0}', space=vmem, size = 0x400, scoped, tag = 'output window, operand 0, single buffered']
    #allocation3 [shape = 's32[1]{0}', space=sflag, size = 0x4, scoped, tag = 'scoped memory for attention_forward.1']
    %13 = vsyncpa [#allocation3], 0
    // Predicated region
    $region2: #{attention_forward.1} parent=1 // pred_check
      _
    $region3: #{attention_forward.1} parent=1 // pred_check_branch
      %15 = sbr.rel (0) target = $region5
    $region4: #{attention_forward.1} parent=1 // pred_region
      _
    $region5: #{attention_forward.1} parent=1 // pred_fallthru
      _
    // Predicated region
    $region6: #{attention_forward.1} parent=1 // pred_check
      _
    $region7: #{attention_forward.1} parent=1 // pred_check_branch
      %17 = sbr.rel (0) target = $region9
    $region8: #{attention_forward.1} parent=1 // pred_region
      _
    $region9: #{attention_forward.1} parent=1 // pred_fallthru
      _
    // Predicated region
    $region10: #{attention_forward.1} parent=1 // pred_check
      _
    $region11: #{attention_forward.1} parent=1 // pred_check_branch
      %19 = sbr.rel (0) target = $region13
    $region12: #{attention_forward.1} parent=1 // pred_region
      _
    $region13: #{attention_forward.1} parent=1 // pred_fallthru
      _
    // Predicated region
    $region14: #{attention_forward.1} parent=1 // pred_check
      _
    $region15: #{attention_forward.1} parent=1 // pred_check_branch
      %21 = sbr.rel (0) target = $region17
    $region16: #{attention_forward.1} parent=1 // pred_region
      _
    $region17: #{attention_forward.1} parent=1 // pred_fallthru
      _
    // Predicated region
    $region18: #{attention_forward.1} parent=1 // pred_check
      _
    $region19: #{attention_forward.1} parent=1 // pred_check_branch
      %23 = sbr.rel (0) target = $region21
    $region20: #{attention_forward.1} parent=1 // pred_region
      _
    $region21: #{attention_forward.1} parent=1 // pred_fallthru
      _
    // Predicated region
    $region22: #{attention_forward.1} parent=1 // pred_check
      _
    $region23: #{attention_forward.1} parent=1 // pred_check_branch
      %25 = sbr.rel (0) target = $region25
    $region24: #{attention_forward.1} parent=1 // pred_region
      _
    $region25: #{attention_forward.1} parent=1 // pred_fallthru
      _
    %v27 = vlaneseq
    %v28 = vshrl.u32 %v27, 7
    %v29 = vadd.s32 %v28, 8
    %v30 = vadd.s32 %v28, 16
    %v31 = vadd.s32 %v28, 24
    %v32 = vlaneseq
    %v33 = vand.u32 %v32, 127
    %v34 = vmul.u32 %v33, 16
    %vm35 = vcmp.ge.s32.totalorder %v28, %v34
    %vm36 = vcmp.ge.s32.totalorder %v29, %v34
    %vm37 = vcmp.ge.s32.totalorder %v30, %v34
    %vm38 = vcmp.ge.s32.totalorder %v31, %v34
    %v39 = vadd.s32 %v33, 1
    %v40 = vmul.u32 %v39, 16
    %vm41 = vcmp.lt.s32.totalorder %v28, %v40
    %vm42 = vcmp.lt.s32.totalorder %v29, %v40
    %vm43 = vcmp.lt.s32.totalorder %v30, %v40
    %vm44 = vcmp.lt.s32.totalorder %v31, %v40
    %vm45 = vmand %vm35, %vm41
    %vm46 = vmand %vm36, %vm42
    %vm47 = vmand %vm37, %vm43
    %vm48 = vmand %vm38, %vm44
    %v49 = vld [vmem:[%s0] sm:$0xff]
    %v50 = vld [vmem:[%s0 + $0x8] sm:$0xff]
    %v51 = vld [vmem:[%s0 + $0x10] sm:$0xff]
    %v52 = vld [vmem:[%s0 + $0x18] sm:$0xff]
    %v53 = vpack.c.bf16 %v50, %v49
    %v54 = vpack.c.bf16 %v52, %v51
    %v55 = vld [vmem:[%s2] sm:$0xf]
    %v56 = vld [vmem:[%s2 + $0x4] sm:$0xf]
    %v57 = vld [vmem:[%s2 + $0x8] sm:$0xf]
    %v58 = vld [vmem:[%s2 + $0xc] sm:$0xf]
    %v59 = vld [vmem:[%s1] sm:$0x3]
    %v60 = vpack.c.bf16 %v59, %v59
    %v61 = vld [vmem:[%s3] sm:$0xf]
    %v62 = vld [vmem:[%s3 + $0x4] sm:$0xf]
    %v63 = vld [vmem:[%s3 + $0x8] sm:$0xf]
    %v64 = vld [vmem:[%s3 + $0xc] sm:$0xf]
    %v65 = vld [vmem:[%s3 + $0x10] sm:$0xf]
    %v66 = vld [vmem:[%s3 + $0x14] sm:$0xf]
    %v67 = vld [vmem:[%s3 + $0x18] sm:$0xf]
    %v68 = vld [vmem:[%s3 + $0x1c] sm:$0xf]
    %v69 = vld [vmem:[%s4] sm:$0x1]
    %v71 = vlaneseq
    %v72 = vshrl.u32 %v71, 7
    %v73 = vsub.s32 0, %v72
    %v74 = vrot.slane %v69, %v73
    %v84 = vunpack.c.l.b16 %v61
    %v85 = vunpack.c.l.b16 %v62
    %v86 = vunpack.c.l.b16 %v63
    %v87 = vunpack.c.l.b16 %v64
    %v88 = vunpack.c.l.b16 %v65
    %v89 = vunpack.c.l.b16 %v66
    %v90 = vunpack.c.l.b16 %v67
    %v91 = vunpack.c.l.b16 %v68
    %v92 = vpack.c.b16 %v85, %v84
    %v93 = vpack.c.b16 %v87, %v86
    %v94 = vpack.c.b16 %v89, %v88
    %v95 = vpack.c.b16 %v91, %v90
    %vm100 = vcmask 523264
    %v102 = vsel %vm100, %v60, 0
    %104 = vmatprep.subr.bf16.mxu0 0
    %105 = vmatpush1.bf16.msra.mxu0 0
    %106 = vmatprep.subr.bf16.mxu0 0
    %107 = vmatpush1.bf16.msra.mxu0 0
    %108 = vmatprep.subr.bf16.mxu0 0
    %109 = vmatpush1.bf16.msra.mxu0 0
    %110 = vmatprep.subr.bf16.mxu0 0
    %111 = vmatpush1.bf16.msra.mxu0 0
    %112 = vmatprep.subr.bf16.mxu0 0
    %113 = vmatpush1.bf16.msra.mxu0 %v95
    %114 = vmatprep.subr.bf16.mxu0 0
    %115 = vmatpush1.bf16.msra.mxu0 %v94
    %116 = vmatprep.subr.bf16.mxu0 0
    %117 = vmatpush1.bf16.msra.mxu0 %v93
    %118 = vmatprep.subr.bf16.mxu0 0
    %119 = vmatpush1.bf16.msra.mxu0 %v92
    %120 = vmatprep.subr.bf16.mxu0 0
    %121 = vmatpush2.bf16.msra.mxu0 0
    %122 = vmatprep.subr.bf16.mxu0 0
    %123 = vmatpush2.bf16.msra.mxu0 0
    %124 = vmatprep.subr.bf16.mxu0 0
    %125 = vmatpush2.bf16.msra.mxu0 0
    %126 = vmatprep.subr.bf16.mxu0 0
    %127 = vmatpush2.bf16.msra.mxu0 0
    %128 = vmatprep.subr.bf16.mxu0 0
    %129 = vmatpush2.bf16.msra.mxu0 0
    %130 = vmatprep.subr.bf16.mxu0 0
    %131 = vmatpush2.bf16.msra.mxu0 0
    %132 = vmatprep.subr.bf16.mxu0 0
    %133 = vmatpush2.bf16.msra.mxu0 0
    %134 = vmatprep.subr.bf16.mxu0 0
    %135 = vmatpush2.bf16.msra.mxu0 0
    %136 = vmatprep.mubr.bf16.mxu0 0
    %137 = vmatmul.mubr.bf16.gmra.mxu0 %v102
    %v138 = vpop.f32.mrf.mxu0
    %v139 = vadd.f32 %v74, %v138
    %v140 = vpop.f32.mrf.mxu0
    %v141 = vpop.f32.mrf.mxu0
    %v142 = vpop.f32.mrf.mxu0
    %143 = vdwg.mxu0
    %v144 = vsel %vm45, 1, 0
    %v145 = vsel %vm46, 1, 0
    %v146 = vsel %vm47, 1, 0
    %v147 = vsel %vm48, 1, 0
    %v148 = vcvt.s32.f32 %v144
    %v149 = vcvt.s32.f32 %v145
    %v150 = vcvt.s32.f32 %v146
    %v151 = vcvt.s32.f32 %v147
    %vm152 = vcmask 15360
    %v154 = vsel %vm152, %v148, 0
    %v157 = vsel %vm152, %v149, 0
    %v160 = vsel %vm152, %v150, 0
    %v163 = vsel %vm152, %v151, 0
    %vm165 = vcmask 1041408
    %v167 = vsel %vm165, %v139, 0
    %169 = vmatprep.subr.mxu0 0.0
    %170 = vmatpush1.msra.mxu0 0.0
    %171 = vmatprep.subr.mxu0 0.0
    %172 = vmatpush1.msra.mxu0 0.0
    %173 = vmatprep.subr.mxu0 0.0
    %174 = vmatpush1.msra.mxu0 0.0
    %175 = vmatprep.subr.mxu0 0.0
    %176 = vmatpush1.msra.mxu0 0.0
    %177 = vmatprep.subr.mxu0 0.0
    %178 = vmatpush1.msra.mxu0 0.0
    %179 = vmatprep.subr.mxu0 0.0
    %180 = vmatpush1.msra.mxu0 0.0
    %181 = vmatprep.subr.mxu0 0.0
    %182 = vmatpush1.msra.mxu0 0.0
    %183 = vmatprep.subr.mxu0 0.0
    %184 = vmatpush1.msra.mxu0 0.0
    %185 = vmatprep.subr.mxu0 0.0
    %186 = vmatpush1.msra.mxu0 0.0
    %187 = vmatprep.subr.mxu0 0.0
    %188 = vmatpush1.msra.mxu0 0.0
    %189 = vmatprep.subr.mxu0 0.0
    %190 = vmatpush1.msra.mxu0 0.0
    %191 = vmatprep.subr.mxu0 0.0
    %192 = vmatpush1.msra.mxu0 0.0
    %193 = vmatprep.subr.mxu0 0.0
    %194 = vmatpush1.msra.mxu0 0.0
    %195 = vmatprep.subr.mxu0 0.0
    %196 = vmatpush1.msra.mxu0 0.0
    %197 = vmatprep.subr.mxu0 0.0
    %198 = vmatpush1.msra.mxu0 0.0
    %199 = vmatprep.subr.mxu0 0.0
    %200 = vmatpush1.msra.mxu0 %v167
    %201 = vmatprep.subr.mxu0 0.0
    %202 = vmatpush2.msra.mxu0 0.0
    %203 = vmatprep.subr.mxu0 0.0
    %204 = vmatpush2.msra.mxu0 0.0
    %205 = vmatprep.subr.mxu0 0.0
    %206 = vmatpush2.msra.mxu0 0.0
    %207 = vmatprep.subr.mxu0 0.0
    %208 = vmatpush2.msra.mxu0 0.0
    %209 = vmatprep.subr.mxu0 0.0
    %210 = vmatpush2.msra.mxu0 0.0
    %211 = vmatprep.subr.mxu0 0.0
    %212 = vmatpush2.msra.mxu0 0.0
    %213 = vmatprep.subr.mxu0 0.0
    %214 = vmatpush2.msra.mxu0 0.0
    %215 = vmatprep.subr.mxu0 0.0
    %216 = vmatpush2.msra.mxu0 0.0
    %217 = vmatprep.subr.mxu0 0.0
    %218 = vmatpush2.msra.mxu0 0.0
    %219 = vmatprep.subr.mxu0 0.0
    %220 = vmatpush2.msra.mxu0 0.0
    %221 = vmatprep.subr.mxu0 0.0
    %222 = vmatpush2.msra.mxu0 0.0
    %223 = vmatprep.subr.mxu0 0.0
    %224 = vmatpush2.msra.mxu0 0.0
    %225 = vmatprep.subr.mxu0 0.0
    %226 = vmatpush2.msra.mxu0 0.0
    %227 = vmatprep.subr.mxu0 0.0
    %228 = vmatpush2.msra.mxu0 0.0
    %229 = vmatprep.subr.mxu0 0.0
    %230 = vmatpush2.msra.mxu0 0.0
    %231 = vmatprep.subr.mxu0 0.0
    %232 = vmatpush2.msra.mxu0 0.0
    %233 = vmatprep.mubr.f32.mxu0 0.0
    %234 = vmatmul.mubr.f32.gmra.mxu0 %v154
    %v235 = vpop.f32.mrf.mxu0
    %v236 = vadd.f32 0.0, %v235
    %v237 = vpop.f32.mrf.mxu0
    %238 = vmatprep.mubr.f32.mxu0 0.0
    %239 = vmatmul.mubr.f32.gmra.mxu0 %v157
    %v240 = vpop.f32.mrf.mxu0
    %v241 = vadd.f32 0.0, %v240
    %v242 = vpop.f32.mrf.mxu0
    %243 = vmatprep.mubr.f32.mxu0 0.0
    %244 = vmatmul.mubr.f32.gmra.mxu0 %v160
    %v245 = vpop.f32.mrf.mxu0
    %v246 = vadd.f32 0.0, %v245
    %v247 = vpop.f32.mrf.mxu0
    %248 = vmatprep.mubr.f32.mxu0 0.0
    %249 = vmatmul.mubr.f32.gmra.mxu0 %v163
    %v250 = vpop.f32.mrf.mxu0
    %v251 = vadd.f32 0.0, %v250
    %v252 = vpop.f32.mrf.mxu0
    %253 = vdwg.mxu0
    %v258 = vunpack.c.l.b16 %v55
    %v259 = vunpack.c.l.b16 %v56
    %v260 = vunpack.c.l.b16 %v57
    %v261 = vunpack.c.l.b16 %v58
    %v262 = vpack.c.b16 %v259, %v258
    %v263 = vpack.c.b16 %v261, %v260
    %vm266 = vcmask 261120
    %v268 = vsel %vm266, %v53, 0
    %v271 = vsel %vm266, %v54, 0
    %273 = vmatprep.subr.bf16.mxu0 0
    %274 = vmatpush1.bf16.msra.mxu0 0
    %275 = vmatprep.subr.bf16.mxu0 0
    %276 = vmatpush1.bf16.msra.mxu0 0
    %277 = vmatprep.subr.bf16.mxu0 0
    %278 = vmatpush1.bf16.msra.mxu0 0
    %279 = vmatprep.subr.bf16.mxu0 0
    %280 = vmatpush1.bf16.msra.mxu0 0
    %281 = vmatprep.subr.bf16.mxu0 0
    %282 = vmatpush1.bf16.msra.mxu0 0
    %283 = vmatprep.subr.bf16.mxu0 0
    %284 = vmatpush1.bf16.msra.mxu0 0
    %285 = vmatprep.subr.bf16.mxu0 0
    %286 = vmatpush1.bf16.msra.mxu0 %v263
    %287 = vmatprep.subr.bf16.mxu0 0
    %288 = vmatpush1.bf16.msra.mxu0 %v262
    %289 = vmatprep.subr.bf16.mxu0 0
    %290 = vmatpush2.bf16.msra.mxu0 0
    %291 = vmatprep.subr.bf16.mxu0 0
    %292 = vmatpush2.bf16.msra.mxu0 0
    %293 = vmatprep.subr.bf16.mxu0 0
    %294 = vmatpush2.bf16.msra.mxu0 0
    %295 = vmatprep.subr.bf16.mxu0 0
    %296 = vmatpush2.bf16.msra.mxu0 0
    %297 = vmatprep.subr.bf16.mxu0 0
    %298 = vmatpush2.bf16.msra.mxu0 0
    %299 = vmatprep.subr.bf16.mxu0 0
    %300 = vmatpush2.bf16.msra.mxu0 0
    %301 = vmatprep.subr.bf16.mxu0 0
    %302 = vmatpush2.bf16.msra.mxu0 0
    %303 = vmatprep.subr.bf16.mxu0 0
    %304 = vmatpush2.bf16.msra.mxu0 0
    %305 = vmatprep.mubr.bf16.mxu0 0
    %306 = vmatmul.mubr.bf16.gmra.mxu0 %v268
    %v307 = vpop.f32.mrf.mxu0
    %v308 = vadd.f32 %v236, %v307
    %v309 = vpop.f32.mrf.mxu0
    %v310 = vpop.f32.mrf.mxu0
    %v311 = vadd.f32 %v241, %v310
    %v312 = vpop.f32.mrf.mxu0
    %313 = vmatprep.mubr.bf16.mxu0 0
    %314 = vmatmul.mubr.bf16.gmra.mxu0 %v271
    %v315 = vpop.f32.mrf.mxu0
    %v316 = vadd.f32 %v246, %v315
    %v317 = vpop.f32.mrf.mxu0
    %v318 = vpop.f32.mrf.mxu0
    %v319 = vadd.f32 %v251, %v318
    %v320 = vpop.f32.mrf.mxu0
    %321 = vdwg.mxu0
    %v322 = vmax.f32 %v308, 0.0
    %v323 = vmax.f32 %v311, 0.0
    %v324 = vmax.f32 %v316, 0.0
    %v325 = vmax.f32 %v319, 0.0
    %v326 = vld [vmem:[%s5] sm:$0xff]
    %v327 = vld [vmem:[%s5 + $0x8] sm:$0xff]
    %v328 = vld [vmem:[%s5 + $0x10] sm:$0xff]
    %v329 = vld [vmem:[%s5 + $0x18] sm:$0xff]
    %v331 = vsel %vm266, %v322, 0
    %v334 = vsel %vm266, %v323, 0
    %v337 = vsel %vm266, %v324, 0
    %v340 = vsel %vm266, %v325, 0
    %342 = vmatprep.subr.mxu0 0.0
    %343 = vmatpush1.msra.mxu0 0.0
    %344 = vmatprep.subr.mxu0 0.0
    %345 = vmatpush1.msra.mxu0 0.0
    %346 = vmatprep.subr.mxu0 0.0
    %347 = vmatpush1.msra.mxu0 0.0
    %348 = vmatprep.subr.mxu0 0.0
    %349 = vmatpush1.msra.mxu0 0.0
    %350 = vmatprep.subr.mxu0 0.0
    %351 = vmatpush1.msra.mxu0 0.0
    %352 = vmatprep.subr.mxu0 0.0
    %353 = vmatpush1.msra.mxu0 0.0
    %354 = vmatprep.subr.mxu0 0.0
    %355 = vmatpush1.msra.mxu0 0.0
    %356 = vmatprep.subr.mxu0 0.0
    %357 = vmatpush1.msra.mxu0 0.0
    %358 = vmatprep.subr.mxu0 0.0
    %359 = vmatpush1.msra.mxu0 0.0
    %360 = vmatprep.subr.mxu0 0.0
    %361 = vmatpush1.msra.mxu0 0.0
    %362 = vmatprep.subr.mxu0 0.0
    %363 = vmatpush1.msra.mxu0 0.0
    %364 = vmatprep.subr.mxu0 0.0
    %365 = vmatpush1.msra.mxu0 0.0
    %366 = vmatprep.subr.mxu0 0.0
    %367 = vmatpush1.msra.mxu0 %v329
    %368 = vmatprep.subr.mxu0 0.0
    %369 = vmatpush1.msra.mxu0 %v328
    %370 = vmatprep.subr.mxu0 0.0
    %371 = vmatpush1.msra.mxu0 %v327
    %372 = vmatprep.subr.mxu0 0.0
    %373 = vmatpush1.msra.mxu0 %v326
    %374 = vmatprep.subr.mxu0 0.0
    %375 = vmatpush2.msra.mxu0 0.0
    %376 = vmatprep.subr.mxu0 0.0
    %377 = vmatpush2.msra.mxu0 0.0
    %378 = vmatprep.subr.mxu0 0.0
    %379 = vmatpush2.msra.mxu0 0.0
    %380 = vmatprep.subr.mxu0 0.0
    %381 = vmatpush2.msra.mxu0 0.0
    %382 = vmatprep.subr.mxu0 0.0
    %383 = vmatpush2.msra.mxu0 0.0
    %384 = vmatprep.subr.mxu0 0.0
    %385 = vmatpush2.msra.mxu0 0.0
    %386 = vmatprep.subr.mxu0 0.0
    %387 = vmatpush2.msra.mxu0 0.0
    %388 = vmatprep.subr.mxu0 0.0
    %389 = vmatpush2.msra.mxu0 0.0
    %390 = vmatprep.subr.mxu0 0.0
    %391 = vmatpush2.msra.mxu0 0.0
    %392 = vmatprep.subr.mxu0 0.0
    %393 = vmatpush2.msra.mxu0 0.0
    %394 = vmatprep.subr.mxu0 0.0
    %395 = vmatpush2.msra.mxu0 0.0
    %396 = vmatprep.subr.mxu0 0.0
    %397 = vmatpush2.msra.mxu0 0.0
    %398 = vmatprep.subr.mxu0 0.0
    %399 = vmatpush2.msra.mxu0 0.0
    %400 = vmatprep.subr.mxu0 0.0
    %401 = vmatpush2.msra.mxu0 0.0
    %402 = vmatprep.subr.mxu0 0.0
    %403 = vmatpush2.msra.mxu0 0.0
    %404 = vmatprep.subr.mxu0 0.0
    %405 = vmatpush2.msra.mxu0 0.0
    %406 = vmatprep.mubr.f32.mxu0 0.0
    %407 = vmatmul.mubr.f32.gmra.mxu0 %v331
    %v408 = vpop.f32.mrf.mxu0
    %v409 = vadd.f32 0.0, %v408
    %v410 = vpop.f32.mrf.mxu0
    %411 = vmatprep.mubr.f32.mxu0 0.0
    %412 = vmatmul.mubr.f32.gmra.mxu0 %v334
    %v413 = vpop.f32.mrf.mxu0
    %v414 = vadd.f32 0.0, %v413
    %v415 = vpop.f32.mrf.mxu0
    %416 = vmatprep.mubr.f32.mxu0 0.0
    %417 = vmatmul.mubr.f32.gmra.mxu0 %v337
    %v418 = vpop.f32.mrf.mxu0
    %v419 = vadd.f32 0.0, %v418
    %v420 = vpop.f32.mrf.mxu0
    %421 = vmatprep.mubr.f32.mxu0 0.0
    %422 = vmatmul.mubr.f32.gmra.mxu0 %v340
    %v423 = vpop.f32.mrf.mxu0
    %v424 = vadd.f32 0.0, %v423
    %v425 = vpop.f32.mrf.mxu0
    %426 = vdwg.mxu0
    %428 = vset.pattern.permute.xlu0 0
    %429 = vperm.xlu0 %428, %v409
    %v430 = vpop.permute.xlu0 %429
    %433 = vset.pattern.permute.xlu0 0
    %434 = vperm.xlu0 %433, %v414
    %v435 = vpop.permute.xlu0 %434
    %438 = vset.pattern.permute.xlu0 0
    %439 = vperm.xlu0 %438, %v419
    %v440 = vpop.permute.xlu0 %439
    %443 = vset.pattern.permute.xlu0 0
    %444 = vperm.xlu0 %443, %v424
    %v445 = vpop.permute.xlu0 %444
    %v447 = vsel %vm45, %v430, -1e+30
    %v448 = vsel %vm46, %v435, -1e+30
    %v449 = vsel %vm47, %v440, -1e+30
    %v450 = vsel %vm48, %v445, -1e+30
    %v451 = vsel %vm152, %v447, -inf
    %v452 = vsel %vm152, %v448, -inf
    %v453 = vsel %vm152, %v449, -inf
    %v454 = vsel %vm152, %v450, -inf
    %v455 = vmax.f32 %v451, %v452
    %v456 = vmax.f32 %v453, %v454
    %v457 = vmax.f32 %v455, %v456
    %v458 = vrot.slane %v457, 4
    %v459 = vmax.f32 %v457, %v458
    %v460 = vrot.slane %v459, 2
    %v461 = vmax.f32 %v459, %v460
    %v462 = vrot.slane %v461, 1
    %v463 = vmax.f32 %v461, %v462
    %v464 = vsel %vm45, %v463, 0.0
    %v465 = vsel %vm46, %v463, 0.0
    %v466 = vsel %vm47, %v463, 0.0
    %v467 = vsel %vm48, %v463, 0.0
    %v468 = vsel %vm152, %v464, 0.0
    %469 = vadd.xlane.f32.xlu0 %v468
    %v470 = vpop.xlane.xlu0 %469
    %v471 = vsel %vm152, %v465, 0.0
    %472 = vadd.xlane.f32.xlu0 %v471
    %v473 = vpop.xlane.xlu0 %472
    %v474 = vsel %vm152, %v466, 0.0
    %475 = vadd.xlane.f32.xlu0 %v474
    %v476 = vpop.xlane.xlu0 %475
    %v477 = vsel %vm152, %v467, 0.0
    %478 = vadd.xlane.f32.xlu0 %v477
    %v479 = vpop.xlane.xlu0 %478
    %v480 = vsub.f32 %v409, %v470
    %v481 = vsub.f32 %v414, %v473
    %v482 = vsub.f32 %v419, %v476
    %v483 = vsub.f32 %v424, %v479
    %v484 = vmul.f32 %v480, 1.442695
    %v485 = vpow.pop %v484
    %v486 = vmul.f32 %v481, 1.442695
    %v487 = vpow.pop %v486
    %v488 = vmul.f32 %v482, 1.442695
    %v489 = vpow.pop %v488
    %v490 = vmul.f32 %v483, 1.442695
    %v491 = vpow.pop %v490
    %493 = vset.pattern.permute.xlu0 0
    %494 = vperm.xlu0 %493, %v485
    %v495 = vpop.permute.xlu0 %494
    %498 = vset.pattern.permute.xlu0 0
    %499 = vperm.xlu0 %498, %v487
    %v500 = vpop.permute.xlu0 %499
    %503 = vset.pattern.permute.xlu0 0
    %504 = vperm.xlu0 %503, %v489
    %v505 = vpop.permute.xlu0 %504
    %508 = vset.pattern.permute.xlu0 0
    %509 = vperm.xlu0 %508, %v491
    %v510 = vpop.permute.xlu0 %509
    %v512 = vsel %vm45, %v495, 0.0
    %v513 = vsel %vm46, %v500, 0.0
    %v514 = vsel %vm47, %v505, 0.0
    %v515 = vsel %vm48, %v510, 0.0
    %v516 = vsel %vm152, %v512, 0.0
    %v517 = vsel %vm152, %v513, 0.0
    %v518 = vadd.f32 %v516, %v517
    %v519 = vsel %vm152, %v514, 0.0
    %v520 = vadd.f32 %v518, %v519
    %v521 = vsel %vm152, %v515, 0.0
    %v522 = vadd.f32 %v520, %v521
    %v523 = vrot.slane %v522, 4
    %v524 = vadd.f32 %v522, %v523
    %v525 = vrot.slane %v524, 2
    %v526 = vadd.f32 %v524, %v525
    %v527 = vrot.slane %v526, 1
    %v528 = vadd.f32 %v526, %v527
    %v529 = vsel %vm45, %v528, 0.0
    %v530 = vsel %vm46, %v528, 0.0
    %v531 = vsel %vm47, %v528, 0.0
    %v532 = vsel %vm48, %v528, 0.0
    %v533 = vsel %vm152, %v529, 0.0
    %534 = vadd.xlane.f32.xlu0 %v533
    %v535 = vpop.xlane.xlu0 %534
    %v536 = vsel %vm152, %v530, 0.0
    %537 = vadd.xlane.f32.xlu0 %v536
    %v538 = vpop.xlane.xlu0 %537
    %v539 = vsel %vm152, %v531, 0.0
    %540 = vadd.xlane.f32.xlu0 %v539
    %v541 = vpop.xlane.xlu0 %540
    %v542 = vsel %vm152, %v532, 0.0
    %543 = vadd.xlane.f32.xlu0 %v542
    %v544 = vpop.xlane.xlu0 %543
    %v545 = vmax.f32 %v535, 1e-30
    %v546 = vmax.f32 %v538, 1e-30
    %v547 = vmax.f32 %v541, 1e-30
    %v548 = vmax.f32 %v544, 1e-30
    %v549 = vrcp.pop %v545
    %v550 = vmul.f32 %v485, %v549
    %v551 = vrcp.pop %v546
    %v552 = vmul.f32 %v487, %v551
    %v553 = vrcp.pop %v547
    %v554 = vmul.f32 %v489, %v553
    %v555 = vrcp.pop %v548
    %v556 = vmul.f32 %v491, %v555
    %vm557 = vcmask 7168
    %558 = vst.msk [vmem:[%s7] sm:$0xff] %vm557, %v550
    %559 = vst.msk [vmem:[%s7 + $0x8] sm:$0xff] %vm557, %v552
    %560 = vst.msk [vmem:[%s7 + $0x10] sm:$0xff] %vm557, %v554
    %561 = vst.msk [vmem:[%s7 + $0x18] sm:$0xff] %vm557, %v556
    %563 = vset.pattern.permute.xlu0 0
    %564 = vperm.xlu0 %563, %v550
    %v565 = vpop.permute.xlu0 %564
    %568 = vset.pattern.permute.xlu0 0
    %569 = vperm.xlu0 %568, %v552
    %v570 = vpop.permute.xlu0 %569
    %573 = vset.pattern.permute.xlu0 0
    %574 = vperm.xlu0 %573, %v554
    %v575 = vpop.permute.xlu0 %574
    %578 = vset.pattern.permute.xlu0 0
    %579 = vperm.xlu0 %578, %v556
    %v580 = vpop.permute.xlu0 %579
    %v582 = vsel %vm45, %v565, 0.0
    %v583 = vsel %vm46, %v570, 0.0
    %v584 = vsel %vm47, %v575, 0.0
    %v585 = vsel %vm48, %v580, 0.0
    %v586 = vpack.c.bf16 %v583, %v582
    %v587 = vpack.c.bf16 %v585, %v584
    %588 = vxpose.xlu0.c.b16.start [1/8] %v586, 128
    %589 = vxpose.xlu0.c.b16.cont [2/8] %v587, 128
    %590 = vxpose.xlu0.c.b16.cont [3/8] 0, 128
    %591 = vxpose.xlu0.c.b16.cont [4/8] 0, 128
    %592 = vxpose.xlu0.c.b16.cont [5/8] 0, 128
    %593 = vxpose.xlu0.c.b16.cont [6/8] 0, 128
    %594 = vxpose.xlu0.c.b16.cont [7/8] 0, 128
    %595 = vxpose.xlu0.c.b16.end [8/8] 0, 128
    %v596 = vpop.trf.xlu0
    %v597 = vpop.trf.xlu0
    %v598 = vpop.trf.xlu0
    %v599 = vpop.trf.xlu0
    %v600 = vpop.trf.xlu0
    %v601 = vpop.trf.xlu0
    %v602 = vpop.trf.xlu0
    %v603 = vpop.trf.xlu0
    %v605 = vsel %vm266, %v596, 0
    %607 = vmatprep.subr.bf16.mxu0 0
    %608 = vmatpush1.bf16.msra.mxu0 0
    %609 = vmatprep.subr.bf16.mxu0 0
    %610 = vmatpush1.bf16.msra.mxu0 0
    %611 = vmatprep.subr.bf16.mxu0 0
    %612 = vmatpush1.bf16.msra.mxu0 0
    %613 = vmatprep.subr.bf16.mxu0 0
    %614 = vmatpush1.bf16.msra.mxu0 0
    %615 = vmatprep.subr.bf16.mxu0 0
    %616 = vmatpush1.bf16.msra.mxu0 0
    %617 = vmatprep.subr.bf16.mxu0 0
    %618 = vmatpush1.bf16.msra.mxu0 0
    %619 = vmatprep.subr.bf16.mxu0 0
    %620 = vmatpush1.bf16.msra.mxu0 %v54
    %621 = vmatprep.subr.bf16.mxu0 0
    %622 = vmatpush1.bf16.msra.mxu0 %v53
    %623 = vmatprep.subr.bf16.mxu0 0
    %624 = vmatpush2.bf16.msra.mxu0 0
    %625 = vmatprep.subr.bf16.mxu0 0
    %626 = vmatpush2.bf16.msra.mxu0 0
    %627 = vmatprep.subr.bf16.mxu0 0
    %628 = vmatpush2.bf16.msra.mxu0 0
    %629 = vmatprep.subr.bf16.mxu0 0
    %630 = vmatpush2.bf16.msra.mxu0 0
    %631 = vmatprep.subr.bf16.mxu0 0
    %632 = vmatpush2.bf16.msra.mxu0 0
    %633 = vmatprep.subr.bf16.mxu0 0
    %634 = vmatpush2.bf16.msra.mxu0 0
    %635 = vmatprep.subr.bf16.mxu0 0
    %636 = vmatpush2.bf16.msra.mxu0 0
    %637 = vmatprep.subr.bf16.mxu0 0
    %638 = vmatpush2.bf16.msra.mxu0 0
    %639 = vmatprep.mubr.bf16.mxu0 0
    %640 = vmatmul.mubr.bf16.gmra.mxu0 %v605
    %v641 = vpop.f32.mrf.mxu0
    %v642 = vadd.f32 0.0, %v641
    %v643 = vpop.f32.mrf.mxu0
    %v644 = vpop.f32.mrf.mxu0
    %v645 = vpop.f32.mrf.mxu0
    %646 = vdwg.mxu0
    %vm647 = vcmask 254976
    %648 = vst.msk [vmem:[#allocation2] sm:$0x3] %vm647, %v642
    // Predicated region
    $region26: #{attention_forward.1} parent=1 // pred_check
      _
    $region27: #{attention_forward.1} parent=1 // pred_check_branch
      %650 = sbr.rel (0) target = $region29
    $region28: #{attention_forward.1} parent=1 // pred_region
      %s652 = ssub.s32 32, 32
      %653 = vsyncadd [#allocation3], %s652
      %s655 = sshll.u32 [#allocation2], 4
      %s656 = int_to_ptr.vmem [resolvable:$true] %s655
      %658 = dma.vmem_to_hbm [thread:$0]  %s656, 32, %s6, [#allocation3]
    $region29: #{attention_forward.1} parent=1 // pred_fallthru
      _
    // Predicated region
    $region30: #{attention_forward.1} parent=1 // pred_check
      _
    $region31: #{attention_forward.1} parent=1 // pred_check_branch
      %660 = sbr.rel (0) target = $region33
    $region32: #{attention_forward.1} parent=1 // pred_region
      _
    $region33: #{attention_forward.1} parent=1 // pred_fallthru
      _
    // Predicated region
    $region34: #{attention_forward.1} parent=1 // pred_check
      _
    $region35: #{attention_forward.1} parent=1 // pred_check_branch
      %662 = sbr.rel (0) target = $region37
    $region36: #{attention_forward.1} parent=1 // pred_region
      %663 = dma.done [#allocation3], 32
    $region37: #{attention_forward.1} parent=1 // pred_fallthru
      _
    // Predicated region
    $region38: #{attention_forward.1} parent=1 // pred_check
      _
    $region39: #{attention_forward.1} parent=1 // pred_check_branch
      %665 = sbr.rel (0) target = $region41
    $region40: #{attention_forward.1} parent=1 // pred_region
      _
    $region41: #{attention_forward.1} parent=1 // pred_fallthru
      _
    %666 = vsyncpa [#allocation3], 1

</llo_original>
